<compile_context>
chip_gen: v6e
topology: v6e:2x2x1
jax: 0.10.0
libtpu: 0.0.40
codegen_flags: <defaults>
</compile_context>

<pallas_src>
import jax
import jax.numpy as jnp
from jax.experimental import pallas as pl
from jax.experimental.pallas import tpu as pltpu

_LANE = 128
_LANE_CANDIDATES = (4096, 2048, 1024, 512, 256, 128)   # lane-dense output widths
_TARGET_BLOCK_BYTES = 2 * 1024 * 1024                  # ~2 MiB per VMEM block
_SUBLANE_MULTIPLE = 32                                  # covers f32/bf16/int8 packing


def _copy_kernel(x_ref, o_ref):
    # Pure pass-through: load the VMEM tile and store it to the output tile.
    o_ref[...] = x_ref[...]


def rnn_forward(x: jax.Array) -> jax.Array:
    """Identity forward matching RNN.forward(x) -> x, via a Pallas copy kernel."""
    orig_shape = x.shape

    n = x.size
    if n == 0:
        return x  # nothing to copy

    flat = x.reshape(-1)

    # Pad (by < 128 elements) so the flattened length is a multiple of the
    # 128-wide lane axis; every store is then full-lane and unmasked.
    padded_n = ((n + _LANE - 1) // _LANE) * _LANE
    if padded_n != n:
        flat = jnp.pad(flat, (0, padded_n - n))

    # Lane-dense reshape: widest lane width that divides the padded length
    # (128 always does by construction).  Row-major reshape of a flat copy is
    # semantics-preserving.
    cols = next(c for c in _LANE_CANDIDATES if padded_n % c == 0)
    rows = padded_n // cols
    x2 = flat.reshape(rows, cols)

    # Row tile sized for ~_TARGET_BLOCK_BYTES per block.  One input + one
    # output, each double-buffered => 4 live buffers (~8 MiB), safely inside
    # the scoped-VMEM limit on all current parts.
    itemsize = jnp.dtype(x2.dtype).itemsize
    target_rows = max(_SUBLANE_MULTIPLE, _TARGET_BLOCK_BYTES // (cols * itemsize))
    target_rows -= target_rows % _SUBLANE_MULTIPLE
    if rows <= target_rows:
        tile_r = rows                       # whole (small) array is one block
        grid = (1,)
    else:
        tile_r = target_rows                # multiple of 32 sublanes
        grid = (pl.cdiv(rows, tile_r),)     # masked tail block if not divisible

    out2 = pl.pallas_call(
        _copy_kernel,
        out_shape=jax.ShapeDtypeStruct((rows, cols), x2.dtype),
        grid=grid,
        in_specs=[pl.BlockSpec((tile_r, cols), lambda i: (i, 0))],
        out_specs=pl.BlockSpec((tile_r, cols), lambda i: (i, 0)),
        compiler_params=pltpu.CompilerParams(
            dimension_semantics=("parallel",),
            vmem_limit_bytes=32 * 1024 * 1024,
        ),
    )(x2)

    out_flat = out2.reshape(-1)
    if padded_n != n:
        out_flat = out_flat[:n]
    return out_flat.reshape(orig_shape)


if __name__ == "__main__":
    key = jax.random.PRNGKey(0)

    # Primary small NCHW-style input consistent with a typical model input.
    x = jax.random.normal(key, (2, 4, 16, 16), dtype=jnp.float32)
    y = rnn_forward(x)
    jax.block_until_ready(y)
    assert y.shape == x.shape, (y.shape, x.shape)
    assert y.dtype == x.dtype, (y.dtype, x.dtype)
    assert bool(jnp.all(y == x)), "identity kernel output mismatch (NCHW case)"

    # Awkward size: exercises the pad + slice path (n not a multiple of 128).
    k1, k2 = jax.random.split(key)
    x_odd = jax.random.normal(k1, (3, 5, 7), dtype=jnp.float32)
    y_odd = rnn_forward(x_odd)
    jax.block_until_ready(y_odd)
    assert y_odd.shape == x_odd.shape and y_odd.dtype == x_odd.dtype
    assert bool(jnp.all(y_odd == x_odd)), "identity kernel output mismatch (odd case)"

    # Moderate size: exercises the multi-block (grid > 1) tiled path.
    x_big = jax.random.normal(k2, (4, 256, 1024), dtype=jnp.float32)
    y_big = rnn_forward(x_big)
    jax.block_until_ready(y_big)
    assert y_big.shape == x_big.shape and y_big.dtype == x_big.dtype
    assert bool(jnp.all(y_big == x_big)), "identity kernel output mismatch (tiled case)"

    print("KERNEL_OK")
</pallas_src>

<mosaic_0001>
module attributes {stable_mosaic.version = 11 : i64} {
  func.func @_copy_kernel(%arg0: i32, %arg1: memref<1x2048xf32, #tpu.memory_space<vmem>>, %arg2: memref<1x2048xf32, #tpu.memory_space<vmem>>) attributes {dimension_semantics = [#tpu.dimension_semantics<parallel>], iteration_bounds = array<i64: 1>, scalar_prefetch = 0 : i64, scratch_operands = 0 : i64, tpu.core_type = #tpu.core_type<tc>, window_params = [{transform_indices = @transform_0, window_bounds = array<i64: 1, 2048>}, {transform_indices = @transform_1, window_bounds = array<i64: 1, 2048>}]} {
    %c0 = arith.constant 0 : index
    %c0_0 = arith.constant 0 : index
    %0 = vector.load %arg1[%c0, %c0_0] : memref<1x2048xf32, #tpu.memory_space<vmem>>, vector<1x2048xf32>
    %c0_1 = arith.constant 0 : index
    %c0_2 = arith.constant 0 : index
    %1 = vector.load %arg2[%c0_1, %c0_2] : memref<1x2048xf32, #tpu.memory_space<vmem>>, vector<1x2048xf32>
    tpu.vector_store %arg2[%c0_1, %c0_2], %0 {strides = array<i32>} : memref<1x2048xf32, #tpu.memory_space<vmem>>, vector<1x2048xf32>,
    return
  }
  func.func @transform_0(%arg0: i32) -> (i32, i32) {
    %c0_i32 = arith.constant 0 : i32
    %c0_i32_0 = arith.constant 0 : i32
    return %arg0, %c0_i32 : i32, i32
  }
  func.func @transform_1(%arg0: i32) -> (i32, i32) {
    %c0_i32 = arith.constant 0 : i32
    %c0_i32_0 = arith.constant 0 : i32
    return %arg0, %c0_i32 : i32, i32
  }
}

</mosaic_0001>

<llo_original>
// kernel: tpu_custom_call.1
$region0: #{tpu_custom_call.1}
  #allocation0 [shape = 'u32[]', space=smem, size = 0x4, offset = 0x4, fixed_abs, tag = 'smem constant byte address 0x4 - core index']
  #allocation1 [shape = 'u32[144,128]{1,0:T(1,128)}', space=vmem, size = 0x12000, scoped, tag = 'internal scratch']
  %s0 = inlined_call_operand.hbm [shape: f32[1,2048], index: 0, kind: input, shape index: {}]
  %s1 = inlined_call_operand.hbm [shape: f32[1,2048], index: 1, kind: output, shape index: {}]
  %s2 = sld [smem:[#allocation0]]
  $region18: #{tpu_custom_call.1} parent=0
    _
  %s4 = ssub.s32 1, %s2
  %s5 = scalar_select 0, %s4, %s2
  $region1: #{tpu_custom_call.1} parent=0
    #allocation2 [shape = 'u8[8192]{0}', space=vmem, size = 0x2000, scoped, tag = 'input window, operand 0, single buffered']
    #allocation3 [shape = 's32[1]{0}', space=sflag, size = 0x4, scoped, tag = 'scoped memory for tpu_custom_call.1']
    #allocation4 [shape = 's32[1]{0}', space=sflag, size = 0x4, scoped, tag = 'scoped memory for tpu_custom_call.1']
    #allocation5 [shape = 'u8[8192]{0}', space=vmem, size = 0x2000, scoped, tag = 'output window, operand 0, single buffered']
    %6 = vsyncpa [#allocation3], 0
    %7 = vsyncpa [#allocation4], 0
    // Predicated region
    $region2: #{tpu_custom_call.1} parent=1 // pred_check
      _
    $region3: #{tpu_custom_call.1} parent=1 // pred_check_branch
      %9 = sbr.rel (0) target = $region5
    $region4: #{tpu_custom_call.1} parent=1 // pred_region
      %s11 = ssub.s32 256, 256
      %12 = vsyncadd [#allocation3], %s11
      %s14 = sshll.u32 [#allocation2], 4
      %s15 = int_to_ptr.vmem [resolvable:$true] %s14
      %17 = dma.hbm_to_vmem [thread:$0]  %s0, 256, %s15, [#allocation3]
    $region5: #{tpu_custom_call.1} parent=1 // pred_fallthru
      _
    // Predicated region
    $region6: #{tpu_custom_call.1} parent=1 // pred_check
      _
    $region7: #{tpu_custom_call.1} parent=1 // pred_check_branch
      %19 = sbr.rel (0) target = $region9
    $region8: #{tpu_custom_call.1} parent=1 // pred_region
      %20 = dma.done [#allocation3], 256
    $region9: #{tpu_custom_call.1} parent=1 // pred_fallthru
      _
    %v21 = vld [vmem:[#allocation2] sm:$0xff]
    %v22 = vld [vmem:[#allocation2 + $0x8] sm:$0xff]
    %23 = vst [vmem:[#allocation5] sm:$0xff] %v21
    %24 = vst [vmem:[#allocation5 + $0x8] sm:$0xff] %v22
    // Predicated region
    $region10: #{tpu_custom_call.1} parent=1 // pred_check
      _
    $region11: #{tpu_custom_call.1} parent=1 // pred_check_branch
      %26 = sbr.rel (0) target = $region13
    $region12: #{tpu_custom_call.1} parent=1 // pred_region
      %s28 = ssub.s32 256, 256
      %29 = vsyncadd [#allocation4], %s28
      %s31 = sshll.u32 [#allocation5], 4
      %s32 = int_to_ptr.vmem [resolvable:$true] %s31
      %34 = dma.vmem_to_hbm [thread:$0]  %s32, 256, %s1, [#allocation4]
    $region13: #{tpu_custom_call.1} parent=1 // pred_fallthru
      _
    // Predicated region
    $region14: #{tpu_custom_call.1} parent=1 // pred_check
      _
    $region15: #{tpu_custom_call.1} parent=1 // pred_check_branch
      %36 = sbr.rel (0) target = $region17
    $region16: #{tpu_custom_call.1} parent=1 // pred_region
      %37 = dma.done [#allocation4], 256
    $region17: #{tpu_custom_call.1} parent=1 // pred_fallthru
      _
    %38 = vsyncpa [#allocation3], 1
    %39 = vsyncpa [#allocation4], 1

</llo_original>
